<compile_context>
chip_gen: v7x
topology: tpu7x:2x2x1
jax: 0.10.0
libtpu: 0.0.40
codegen_flags: <defaults>
</compile_context>

<pallas_src>
import jax
import jax.numpy as jnp
from jax.experimental import pallas as pl
from jax.experimental.pallas import tpu as pltpu


def _decoder_kernel(x_ref, w1t_ref, b1_ref, w2t_ref, b2_ref, o_ref):
    # x_ref : (C_in,  TPX)  f32   -- channels on sublanes, pixels on lanes
    # w1t   : (HID,   C_in) f32
    # b1    : (HID,   1)    f32
    # w2t   : (C_OUT, HID)  bf16  -- MXU operand
    # b2    : (C_OUT, 1)    f32
    # o_ref : (C_OUT, TPX)

    # ---- conv1 (1x1, K = C_in): MXU matmul, f32 accumulate ------------------
    h = jnp.dot(w1t_ref[...], x_ref[...], preferred_element_type=jnp.float32)
    # bias + ReLU + bf16 cast fuse into a single VPU pass over h.
    h = jnp.maximum(h + b1_ref[...], 0.0).astype(jnp.bfloat16)

    # ---- conv2 (1x1, K = HID): bf16 MXU matmul, f32 accumulate --------------
    logits = jnp.dot(w2t_ref[...], h, preferred_element_type=jnp.float32)
    logits = logits + b2_ref[...]

    # ---- per-pixel softmax over output channels (sublane axis, XLU) ---------
    m = jnp.max(logits, axis=0, keepdims=True)          # (1, TPX)
    e = jnp.exp(logits - m)                              # EUP
    denom = jnp.sum(e, axis=0, keepdims=True)            # (1, TPX)
    probs = e * pl.reciprocal(denom, approx=True)        # EUP reciprocal

    o_ref[...] = probs.astype(o_ref.dtype)


def tofu_decode(x_nchw, w1, b1, w2, b2, *, tile_px=32768, out_dtype=None):
    """x_nchw: [B, C_in, H, W] -> [B, C_out, H, W] per-pixel class probabilities."""
    B, C_in, H, W = x_nchw.shape
    hidden = w1.shape[1]
    C_out = w2.shape[1]
    HW = H * W
    if out_dtype is None:
        # Pass out_dtype=jnp.bfloat16 to cut output HBM traffic ~2x if the
        # consumer accepts bf16 probabilities.
        out_dtype = x_nchw.dtype

    # Pixels-on-lanes layout: pure reshape, no NCHW<->NHWC transposes via HBM.
    x = x_nchw.reshape(B, C_in, HW)

    # Lane tile: multiple of 128, derived from HW (big images -> big tiles).
    hw128 = pl.cdiv(HW, 128) * 128
    tpx = min(max(128, (int(tile_px) // 128) * 128), hw128)
    # Keep >= 2 total grid steps when possible so both v7x TensorCores get work.
    if B * pl.cdiv(HW, tpx) < 2 and hw128 >= 256:
        tpx = pl.cdiv(pl.cdiv(hw128, 2), 128) * 128

    # Ragged final pixel block (HW % tpx != 0) is handled in-kernel: reads of
    # the undefined tail are harmless per-lane garbage, writeback is masked.
    grid = (B, pl.cdiv(HW, tpx))

    # Channel-major parameters for the (channels, pixels) compute layout.
    w1t = jnp.transpose(w1).astype(jnp.float32)        # (hidden, C_in)
    b1c = b1.reshape(hidden, 1).astype(jnp.float32)    # (hidden, 1)
    w2t = jnp.transpose(w2).astype(jnp.bfloat16)       # (C_out, hidden), MXU operand
    b2c = b2.reshape(C_out, 1).astype(jnp.float32)     # (C_out, 1)

    out = pl.pallas_call(
        _decoder_kernel,
        out_shape=jax.ShapeDtypeStruct((B, C_out, HW), out_dtype),
        grid_spec=pltpu.PrefetchScalarGridSpec(
            num_scalar_prefetch=0,
            grid=grid,
            in_specs=[
                pl.BlockSpec((None, C_in, tpx), lambda b, i: (b, 0, i)),
                pl.BlockSpec((hidden, C_in), lambda b, i: (0, 0)),
                pl.BlockSpec((hidden, 1), lambda b, i: (0, 0)),
                pl.BlockSpec((C_out, hidden), lambda b, i: (0, 0)),
                pl.BlockSpec((C_out, 1), lambda b, i: (0, 0)),
            ],
            out_specs=pl.BlockSpec((None, C_out, tpx), lambda b, i: (b, 0, i)),
        ),
        compiler_params=pltpu.CompilerParams(
            dimension_semantics=("parallel", "parallel"),
            # ~3 MiB double-buffered I/O + ~10 MiB f32/bf16 intermediates at
            # tpx=32768; 48 MiB leaves headroom yet fits v7x's 64 MiB part
            # (and clears v5e's 16 MiB scoped default).
            vmem_limit_bytes=48 * 1024 * 1024,
        ),
    )(x, w1t, b1c, w2t, b2c)

    # Pure reshape back to NCHW (channels already leading; no slice needed).
    return out.reshape(B, C_out, H, W)


def _reference_decode(x_nchw, w1, b1, w2, b2):
    x = jnp.transpose(x_nchw, (0, 2, 3, 1)).astype(jnp.float32)
    h = jnp.maximum(jnp.einsum("bhwc,cd->bhwd", x, w1) + b1, 0.0)
    logits = jnp.einsum("bhwd,do->bhwo", h, w2) + b2
    probs = jax.nn.softmax(logits, axis=-1)
    return jnp.transpose(probs, (0, 3, 1, 2)).astype(x_nchw.dtype)


if __name__ == "__main__":
    # Small shapes consistent with the module's NCHW conv-style input.
    B, C_IN, H, W = 2, 4, 16, 16
    HIDDEN, C_OUT = 32, 8

    key = jax.random.PRNGKey(0)
    k_x, k_w1, k_b1, k_w2, k_b2 = jax.random.split(key, 5)

    x = jax.random.normal(k_x, (B, C_IN, H, W), dtype=jnp.float32)
    # Deterministic synthetic "decoder" weights.
    w1 = jax.random.normal(k_w1, (C_IN, HIDDEN), dtype=jnp.float32) * 0.1
    b1 = jax.random.normal(k_b1, (HIDDEN,), dtype=jnp.float32) * 0.01
    w2 = jax.random.normal(k_w2, (HIDDEN, C_OUT), dtype=jnp.float32) * 0.1
    b2 = jax.random.normal(k_b2, (C_OUT,), dtype=jnp.float32) * 0.01

    out = jax.block_until_ready(tofu_decode(x, w1, b1, w2, b2))
    ref = _reference_decode(x, w1, b1, w2, b2)
    assert out.shape == (B, C_OUT, H, W), out.shape
    # Tolerance relaxed vs. pure-f32: conv2 uses bf16 MXU operands and the
    # softmax denominator uses the approximate (EUP) reciprocal.
    max_err = float(jnp.max(jnp.abs(out - ref)))
    assert max_err < 1e-2, f"mismatch vs reference: max abs err {max_err}"

    # Ragged H*W (144, not a multiple of 128): exercises the in-kernel masked
    # final-block writeback path (no host-side pad / slice).
    x2 = jax.random.normal(k_x, (B, C_IN, 12, 12), dtype=jnp.float32)
    out2 = jax.block_until_ready(tofu_decode(x2, w1, b1, w2, b2))
    ref2 = _reference_decode(x2, w1, b1, w2, b2)
    max_err2 = float(jnp.max(jnp.abs(out2 - ref2)))
    assert max_err2 < 1e-2, f"ragged-tail mismatch vs reference: {max_err2}"

    print("KERNEL_OK")
</pallas_src>

<mosaic_0001>
module attributes {stable_mosaic.version = 11 : i64} {
  func.func @_decoder_kernel(%arg0: i32, %arg1: i32, %arg2: memref<1x4x256xf32, #tpu.memory_space<vmem>>, %arg3: memref<32x4xf32, #tpu.memory_space<vmem>>, %arg4: memref<32x1xf32, #tpu.memory_space<vmem>>, %arg5: memref<8x32xbf16, #tpu.memory_space<vmem>>, %arg6: memref<8x1xf32, #tpu.memory_space<vmem>>, %arg7: memref<1x8x256xf32, #tpu.memory_space<vmem>>) attributes {dimension_semantics = [#tpu.dimension_semantics<parallel>, #tpu.dimension_semantics<parallel>], iteration_bounds = array<i64: 2, 1>, scalar_prefetch = 0 : i64, scratch_operands = 0 : i64, tpu.core_type = #tpu.core_type<tc>, window_params = [{transform_indices = @transform_0, window_bounds = array<i64: 1, 4, 256>}, {pipeline_mode = #tpu.pipeline_mode<synchronous>, transform_indices = @transform_1, window_bounds = array<i64: 32, 4>}, {pipeline_mode = #tpu.pipeline_mode<synchronous>, transform_indices = @transform_2, window_bounds = array<i64: 32, 1>}, {pipeline_mode = #tpu.pipeline_mode<synchronous>, transform_indices = @transform_3, window_bounds = array<i64: 8, 32>}, {pipeline_mode = #tpu.pipeline_mode<synchronous>, transform_indices = @transform_4, window_bounds = array<i64: 8, 1>}, {transform_indices = @transform_5, window_bounds = array<i64: 1, 8, 256>}]} {
    %c0 = arith.constant 0 : index
    %c0_0 = arith.constant 0 : index
    %0 = vector.load %arg3[%c0, %c0_0] : memref<32x4xf32, #tpu.memory_space<vmem>>, vector<32x4xf32>
    %c0_1 = arith.constant 0 : index
    %c0_2 = arith.constant 0 : index
    %c0_3 = arith.constant 0 : index
    %1 = vector.load %arg2[%c0_1, %c0_2, %c0_3] : memref<1x4x256xf32, #tpu.memory_space<vmem>>, vector<1x4x256xf32>
    %2 = vector.shape_cast %1 : vector<1x4x256xf32> to vector<4x256xf32>
    %cst = arith.constant dense<0.000000e+00> : vector<32x256xf32>
    %3 = tpu.matmul %0, %2, %cst {dimension_numbers = #tpu.dot_dimension_numbers<[1], [0], [0], [1], [0, 0, 1, 1], [], []>} : vector<32x4xf32>, vector<4x256xf32>, vector<32x256xf32> -> vector<32x256xf32>
    %c0_4 = arith.constant 0 : index
    %c0_5 = arith.constant 0 : index
    %4 = vector.load %arg4[%c0_4, %c0_5] : memref<32x1xf32, #tpu.memory_space<vmem>>, vector<32x1xf32>
    %5 = vector.broadcast %4 : vector<32x1xf32> to vector<32x256xf32>
    %6 = arith.addf %3, %5 : vector<32x256xf32>
    %cst_6 = arith.constant 0.000000e+00 : f32
    %7 = vector.broadcast %cst_6 : f32 to vector<32x256xf32>
    %8 = arith.maximumf %6, %7 : vector<32x256xf32>
    %9 = arith.truncf %8 : vector<32x256xf32> to vector<32x256xbf16>
    %c0_7 = arith.constant 0 : index
    %c0_8 = arith.constant 0 : index
    %10 = vector.load %arg5[%c0_7, %c0_8] : memref<8x32xbf16, #tpu.memory_space<vmem>>, vector<8x32xbf16>
    %cst_9 = arith.constant dense<0.000000e+00> : vector<8x256xf32>
    %11 = tpu.matmul %10, %9, %cst_9 {dimension_numbers = #tpu.dot_dimension_numbers<[1], [0], [0], [1], [0, 0, 1, 1], [], []>} : vector<8x32xbf16>, vector<32x256xbf16>, vector<8x256xf32> -> vector<8x256xf32>
    %c0_10 = arith.constant 0 : index
    %c0_11 = arith.constant 0 : index
    %12 = vector.load %arg6[%c0_10, %c0_11] : memref<8x1xf32, #tpu.memory_space<vmem>>, vector<8x1xf32>
    %13 = vector.broadcast %12 : vector<8x1xf32> to vector<8x256xf32>
    %14 = arith.addf %11, %13 : vector<8x256xf32>
    %cst_12 = arith.constant dense<0xFF800000> : vector<256xf32>
    %15 = vector.multi_reduction <maximumf>, %14, %cst_12 [0] : vector<8x256xf32> to vector<256xf32>
    %16 = vector.shape_cast %15 : vector<256xf32> to vector<1x256xf32>
    %17 = vector.broadcast %16 : vector<1x256xf32> to vector<8x256xf32>
    %18 = arith.subf %14, %17 : vector<8x256xf32>
    %19 = math.exp %18 : vector<8x256xf32>
    %cst_13 = arith.constant dense<0.000000e+00> : vector<256xf32>
    %20 = vector.multi_reduction <add>, %19, %cst_13 [0] : vector<8x256xf32> to vector<256xf32>
    %21 = vector.shape_cast %20 : vector<256xf32> to vector<1x256xf32>
    %22 = tpu.reciprocal %21 {approx = true} : vector<1x256xf32> -> vector<1x256xf32>
    %23 = vector.broadcast %22 : vector<1x256xf32> to vector<8x256xf32>
    %24 = arith.mulf %19, %23 : vector<8x256xf32>
    %c0_14 = arith.constant 0 : index
    %c0_15 = arith.constant 0 : index
    %c0_16 = arith.constant 0 : index
    %25 = vector.load %arg7[%c0_14, %c0_15, %c0_16] : memref<1x8x256xf32, #tpu.memory_space<vmem>>, vector<1x8x256xf32>
    %26 = vector.shape_cast %25 : vector<1x8x256xf32> to vector<8x256xf32>
    %27 = vector.shape_cast %24 : vector<8x256xf32> to vector<1x8x256xf32>
    tpu.vector_store %arg7[%c0_14, %c0_15, %c0_16], %27 {strides = array<i32>} : memref<1x8x256xf32, #tpu.memory_space<vmem>>, vector<1x8x256xf32>,
    return
  }
  func.func @transform_0(%arg0: i32, %arg1: i32) -> (i32, i32, i32) {
    %c0_i32 = arith.constant 0 : i32
    %c0_i32_0 = arith.constant 0 : i32
    return %arg0, %c0_i32, %arg1 : i32, i32, i32
  }
  func.func @transform_1(%arg0: i32, %arg1: i32) -> (i32, i32) {
    %c0_i32 = arith.constant 0 : i32
    %c0_i32_0 = arith.constant 0 : i32
    %c0_i32_1 = arith.constant 0 : i32
    return %c0_i32, %c0_i32_0 : i32, i32
  }
  func.func @transform_2(%arg0: i32, %arg1: i32) -> (i32, i32) {
    %c0_i32 = arith.constant 0 : i32
    %c0_i32_0 = arith.constant 0 : i32
    %c0_i32_1 = arith.constant 0 : i32
    return %c0_i32, %c0_i32_0 : i32, i32
  }
  func.func @transform_3(%arg0: i32, %arg1: i32) -> (i32, i32) {
    %c0_i32 = arith.constant 0 : i32
    %c0_i32_0 = arith.constant 0 : i32
    %c0_i32_1 = arith.constant 0 : i32
    return %c0_i32, %c0_i32_0 : i32, i32
  }
  func.func @transform_4(%arg0: i32, %arg1: i32) -> (i32, i32) {
    %c0_i32 = arith.constant 0 : i32
    %c0_i32_0 = arith.constant 0 : i32
    %c0_i32_1 = arith.constant 0 : i32
    return %c0_i32, %c0_i32_0 : i32, i32
  }
  func.func @transform_5(%arg0: i32, %arg1: i32) -> (i32, i32, i32) {
    %c0_i32 = arith.constant 0 : i32
    %c0_i32_0 = arith.constant 0 : i32
    return %arg0, %c0_i32, %arg1 : i32, i32, i32
  }
}

</mosaic_0001>

<llo_original>
// kernel: tpu_custom_call.1
$region0: #{tpu_custom_call.1}
  #allocation0 [shape = 'u32[]', space=smem, size = 0x4, offset = 0x4, fixed_abs, tag = 'smem constant byte address 0x4 - core index']
  #allocation1 [shape = 'u32[144,128]{1,0:T(1,128)}', space=vmem, size = 0x12000, scoped, tag = 'internal scratch']
  %s0 = inlined_call_operand.vmem [shape: f32[2,4,256], index: 0, kind: input, shape index: {}]
  %s1 = inlined_call_operand.vmem [shape: f32[32,4], index: 1, kind: input, shape index: {}]
  %s2 = inlined_call_operand.vmem [shape: f32[32,1], index: 2, kind: input, shape index: {}]
  %s3 = inlined_call_operand.vmem [shape: bf16[8,32], index: 3, kind: input, shape index: {}]
  %s4 = inlined_call_operand.vmem [shape: f32[8,1], index: 4, kind: input, shape index: {}]
  %s5 = inlined_call_operand.hbm [shape: f32[2,8,256], index: 5, kind: output, shape index: {}]
  %s6 = sld [smem:[#allocation0]]
  $region53: #{tpu_custom_call.1} parent=0
    _
  %s8 = ssub.s32 1, %s6
  %s9 = scalar_select 0, %s8, %s6
  $region1: #{tpu_custom_call.1} parent=0
    #allocation2 [shape = 'u8[16384]{0}', space=vmem, size = 0x4000, scoped, tag = 'output window, operand 0']
    #allocation3 [shape = 's32[2]{0}', space=sflag, size = 0x8, scoped, tag = 'scoped memory for tpu_custom_call.1']
    %10 = vsyncpa [#allocation3], 0
    %s11 = scalar_lea.sflag [#allocation3], 1
    %12 = vsyncpa %s11, 0
    loop: start=0, step=1, limit=4
    $region2: #{tpu_custom_call.1} parent=1 // loop_pre_header
      _
    $region3: #{tpu_custom_call.1} parent=1 // loop_header
      %s14 = sphi 0, %s18
      %p15 = scmp.ge.s32.totalorder %s14, 4
      %s21 = sphi 0, %s33
      %s22 = sphi 0, %s29
      %s23 = sphi 0, %s21
      %s24 = sphi 0, %s22
      %s25 = sphi 0, %s23
      %s26 = sphi 0, %s24
      %s38 = sphi 0, %s40
      %s41 = sphi 0, %s38
      %s42 = sphi 0, %s41
      %s58 = sphi 0, %s42
      %s62 = sphi 0, %s62
      %s64 = sphi 0, %s62
      %s65 = sphi 0, %s64
      %s79 = sphi 0, %s65
      %s83 = sphi 0, %s83
      %s85 = sphi 0, %s83
      %s86 = sphi 0, %s85
      %s100 = sphi 0, %s86
      %s104 = sphi 0, %s104
      %s106 = sphi 0, %s104
      %s107 = sphi 0, %s106
      %s121 = sphi 0, %s107
      %s125 = sphi 0, %s125
      %s127 = sphi 0, %s125
      %s128 = sphi 0, %s127
      %s142 = sphi 0, %s128
      %s150 = sphi 0, %s152
      %s153 = sphi 0, %s150
      %s154 = sphi 0, %s153
      %s170 = sphi 0, %s154
    $region4: #{tpu_custom_call.1} parent=1 // loop_header_branch
      %17 = sbr.rel (%p15) target = $region8
    $region5: #{tpu_custom_call.1} parent=1 // loop_body
      %s19 = ssub.s32 %s14, 1
      %s20 = ssub.s32 %s14, 2
      %s27 = sadd.s32 1, %s22
      %p28 = scmp.ge.s32.totalorder %s27, 1
      %s29 = scalar_select %p28, 0, %s27
      %s30 = sadd.s32 1, %s21
      %s31 = scalar_select %p28, %s30, %s21
      %p32 = scmp.ge.s32.totalorder %s31, 2
      %s33 = scalar_select %p32, 0, %s31
      %s34 = ssub.s32 %s21, %s33
      %s35 = ssub.s32 %s22, %s29
      %s36 = sor.u32 %s34, %s35
      %p37 = scmp.eq.s32.totalorder %s36, 0
      %s39 = sadd.s32 %s38, 1
      %s40 = scalar_select %p37, %s38, %s39
      %p43 = pneg %p37
      %p44 = scmp.eq.s32.totalorder %s14, 1
      %p45 = por %p43, %p44
      %p46 = scmp.ne.s32.totalorder %s38, %s41
      %p47 = scmp.eq.s32.totalorder %s14, 0
      %p48 = por %p46, %p47
      %p49 = scmp.ne.s32.totalorder %s38, %s41
      %p50 = scmp.eq.s32.totalorder %s19, 1
      %p51 = por %p49, %p50
      %p52 = scmp.ne.s32.totalorder %s41, %s42
      %p53 = scmp.eq.s32.totalorder %s19, 0
      %p54 = por %p52, %p53
      %p55 = scmp.ne.s32.totalorder %s41, %s42
      %p56 = scmp.eq.s32.totalorder %s20, 1
      %p57 = por %p55, %p56
      %p59 = scmp.ne.s32.totalorder %s42, %s58
      %p60 = scmp.eq.s32.totalorder %s20, 0
      %p61 = por %p59, %p60
      %s63 = sadd.s32 %s62, 1
      %p66 = scmp.eq.s32.totalorder %s14, 1
      %p67 = scmp.ne.s32.totalorder %s62, %s64
      %p68 = scmp.eq.s32.totalorder %s14, 0
      %p69 = por %p67, %p68
      %p70 = scmp.ne.s32.totalorder %s62, %s64
      %p71 = scmp.eq.s32.totalorder %s19, 1
      %p72 = por %p70, %p71
      %p73 = scmp.ne.s32.totalorder %s64, %s65
      %p74 = scmp.eq.s32.totalorder %s19, 0
      %p75 = por %p73, %p74
      %p76 = scmp.ne.s32.totalorder %s64, %s65
      %p77 = scmp.eq.s32.totalorder %s20, 1
      %p78 = por %p76, %p77
      %p80 = scmp.ne.s32.totalorder %s65, %s79
      %p81 = scmp.eq.s32.totalorder %s20, 0
      %p82 = por %p80, %p81
      %s84 = sadd.s32 %s83, 1
      %p87 = scmp.eq.s32.totalorder %s14, 1
      %p88 = scmp.ne.s32.totalorder %s83, %s85
      %p89 = scmp.eq.s32.totalorder %s14, 0
      %p90 = por %p88, %p89
      %p91 = scmp.ne.s32.totalorder %s83, %s85
      %p92 = scmp.eq.s32.totalorder %s19, 1
      %p93 = por %p91, %p92
      %p94 = scmp.ne.s32.totalorder %s85, %s86
      %p95 = scmp.eq.s32.totalorder %s19, 0
      %p96 = por %p94, %p95
      %p97 = scmp.ne.s32.totalorder %s85, %s86
      %p98 = scmp.eq.s32.totalorder %s20, 1
      %p99 = por %p97, %p98
      %p101 = scmp.ne.s32.totalorder %s86, %s100
      %p102 = scmp.eq.s32.totalorder %s20, 0
      %p103 = por %p101, %p102
      %s105 = sadd.s32 %s104, 1
      %p108 = scmp.eq.s32.totalorder %s14, 1
      %p109 = scmp.ne.s32.totalorder %s104, %s106
      %p110 = scmp.eq.s32.totalorder %s14, 0
      %p111 = por %p109, %p110
      %p112 = scmp.ne.s32.totalorder %s104, %s106
      %p113 = scmp.eq.s32.totalorder %s19, 1
      %p114 = por %p112, %p113
      %p115 = scmp.ne.s32.totalorder %s106, %s107
      %p116 = scmp.eq.s32.totalorder %s19, 0
      %p117 = por %p115, %p116
      %p118 = scmp.ne.s32.totalorder %s106, %s107
      %p119 = scmp.eq.s32.totalorder %s20, 1
      %p120 = por %p118, %p119
      %p122 = scmp.ne.s32.totalorder %s107, %s121
      %p123 = scmp.eq.s32.totalorder %s20, 0
      %p124 = por %p122, %p123
      %s126 = sadd.s32 %s125, 1
      %p129 = scmp.eq.s32.totalorder %s14, 1
      %p130 = scmp.ne.s32.totalorder %s125, %s127
      %p131 = scmp.eq.s32.totalorder %s14, 0
      %p132 = por %p130, %p131
      %p133 = scmp.ne.s32.totalorder %s125, %s127
      %p134 = scmp.eq.s32.totalorder %s19, 1
      %p135 = por %p133, %p134
      %p136 = scmp.ne.s32.totalorder %s127, %s128
      %p137 = scmp.eq.s32.totalorder %s19, 0
      %p138 = por %p136, %p137
      %p139 = scmp.ne.s32.totalorder %s127, %s128
      %p140 = scmp.eq.s32.totalorder %s20, 1
      %p141 = por %p139, %p140
      %p143 = scmp.ne.s32.totalorder %s128, %s142
      %p144 = scmp.eq.s32.totalorder %s20, 0
      %p145 = por %p143, %p144
      %s146 = ssub.s32 %s21, %s33
      %s147 = ssub.s32 %s22, %s29
      %s148 = sor.u32 %s146, %s147
      %p149 = scmp.eq.s32.totalorder %s148, 0
      %s151 = sadd.s32 %s150, 1
      %s152 = scalar_select %p149, %s150, %s151
      %p155 = pneg %p149
      %p156 = scmp.eq.s32.totalorder %s14, 1
      %p157 = por %p155, %p156
      %p158 = scmp.ne.s32.totalorder %s150, %s153
      %p159 = scmp.eq.s32.totalorder %s14, 0
      %p160 = por %p158, %p159
      %p161 = scmp.ne.s32.totalorder %s150, %s153
      %p162 = scmp.eq.s32.totalorder %s19, 1
      %p163 = por %p161, %p162
      %p164 = scmp.ne.s32.totalorder %s153, %s154
      %p165 = scmp.eq.s32.totalorder %s19, 0
      %p166 = por %p164, %p165
      %p167 = scmp.ne.s32.totalorder %s153, %s154
      %p168 = scmp.eq.s32.totalorder %s20, 1
      %p169 = por %p167, %p168
      %p171 = scmp.ne.s32.totalorder %s154, %s170
      %p172 = scmp.eq.s32.totalorder %s20, 0
      %p173 = por %p171, %p172
      %p174 = scmp.le.s32.totalorder 1, %s14
      %p175 = scmp.lt.s32.totalorder %s14, 3
      %p176 = pnand %p174, %p175
      %p177 = pneg %p176
      // Predicated region
      $region9: #{tpu_custom_call.1} parent=5 // pred_check
        _
      $region10: #{tpu_custom_call.1} parent=5 // pred_check_branch
        %179 = sbr.rel (%p176) target = $region12
      $region11: #{tpu_custom_call.1} parent=5 // pred_region
        %s180 = ssub.s32 %s14, 1
        // Predicated region
        $region13: #{tpu_custom_call.1} parent=11 // pred_check
          %p181 = pneg %p75
        $region14: #{tpu_custom_call.1} parent=11 // pred_check_branch
          %183 = sbr.rel (%p181) target = $region16
        $region15: #{tpu_custom_call.1} parent=11 // pred_region
          _
        $region16: #{tpu_custom_call.1} parent=11 // pred_fallthru
          _
        // Predicated region
        $region17: #{tpu_custom_call.1} parent=11 // pred_check
          %p184 = pneg %p96
        $region18: #{tpu_custom_call.1} parent=11 // pred_check_branch
          %186 = sbr.rel (%p184) target = $region20
        $region19: #{tpu_custom_call.1} parent=11 // pred_region
          _
        $region20: #{tpu_custom_call.1} parent=11 // pred_fallthru
          _
        // Predicated region
        $region21: #{tpu_custom_call.1} parent=11 // pred_check
          %p187 = pneg %p117
        $region22: #{tpu_custom_call.1} parent=11 // pred_check_branch
          %189 = sbr.rel (%p187) target = $region24
        $region23: #{tpu_custom_call.1} parent=11 // pred_region
          _
        $region24: #{tpu_custom_call.1} parent=11 // pred_fallthru
          _
        // Predicated region
        $region25: #{tpu_custom_call.1} parent=11 // pred_check
          %p190 = pneg %p138
        $region26: #{tpu_custom_call.1} parent=11 // pred_check_branch
          %192 = sbr.rel (%p190) target = $region28
        $region27: #{tpu_custom_call.1} parent=11 // pred_region
          _
        $region28: #{tpu_custom_call.1} parent=11 // pred_fallthru
          _
      $region12: #{tpu_custom_call.1} parent=5 // pred_fallthru
        _
      %p193 = scmp.lt.s32.totalorder %s14, 2
      // Predicated region
      $region29: #{tpu_custom_call.1} parent=5 // pred_check
        %p194 = pneg %p193
      $region30: #{tpu_custom_call.1} parent=5 // pred_check_branch
        %196 = sbr.rel (%p194) target = $region32
      $region31: #{tpu_custom_call.1} parent=5 // pred_region
        // Predicated region
        $region33: #{tpu_custom_call.1} parent=31 // pred_check
          %p197 = pneg %p48
        $region34: #{tpu_custom_call.1} parent=31 // pred_check_branch
          %199 = sbr.rel (%p197) target = $region36
        $region35: #{tpu_custom_call.1} parent=31 // pred_region
          %s200 = smul.u32 2, %s22
          %p201 = scmp.lt.s32.totalorder %s21, 1
          %s202 = scalar_select %p201, %s21, 1
          %p203 = scmp.lt.s32.totalorder %s200, 1
          %s204 = scalar_select %p203, %s200, 1
          %s205 = smul.addr %s202, 2
          %s206 = sadd.s32 %s204, %s205
          %s207 = smul.addr %s206, 4
          %s208 = scalar_lea.vmem %s0, %s207
          %s209 = smul.u32 2, %s22
        $region36: #{tpu_custom_call.1} parent=31 // pred_fallthru
          _
      $region32: #{tpu_custom_call.1} parent=5 // pred_fallthru
        _
      %p210 = scmp.le.s32.totalorder 1, %s14
      %p211 = scmp.lt.s32.totalorder %s14, 3
      %p212 = pnand %p210, %p211
      %p213 = pneg %p212
      // Predicated region
      $region37: #{tpu_custom_call.1} parent=5 // pred_check
        _
      $region38: #{tpu_custom_call.1} parent=5 // pred_check_branch
        %215 = sbr.rel (%p212) target = $region40
      $region39: #{tpu_custom_call.1} parent=5 // pred_region
        %s216 = ssub.s32 %s14, 1
        %s217 = smul.u32 2, %s24
        %p218 = scmp.lt.s32.totalorder %s23, 1
        %s219 = scalar_select %p218, %s23, 1
        %p220 = scmp.lt.s32.totalorder %s217, 1
        %s221 = scalar_select %p220, %s217, 1
        %s222 = smul.addr %s219, 2
        %s223 = sadd.s32 %s221, %s222
        %s224 = smul.addr %s223, 4
        %s225 = scalar_lea.vmem %s0, %s224
        %p226 = pneg %p54
        %p227 = pneg %p51
        %p228 = pneg %p75
        %p229 = pneg %p72
        %p230 = pneg %p96
        %p231 = pneg %p93
        %p232 = pneg %p117
        %p233 = pneg %p114
        %p234 = pneg %p138
        %p235 = pneg %p135
        %p236 = pneg %p166
        %p237 = pneg %p163
        %s238 = sand.u32 %s153, 1
        %s239 = scalar_lea.sflag [#allocation3], %s238
        %s240 = sand.u32 %s153, 1
        %s241 = smul.addr %s240, 16
        %s242 = scalar_lea.vmem [#allocation2], %s241
        %s243 = smul.u32 2, %s24
        %p244 = scmp.lt.s32.totalorder %s23, 1
        %s245 = scalar_select %p244, %s23, 1
        %p246 = scmp.lt.s32.totalorder %s243, 1
        %s247 = scalar_select %p246, %s243, 1
        %s248 = smul.addr %s245, 2
        %s249 = sadd.s32 %s247, %s248
        %s250 = smul.addr %s249, 4
        %s251 = scalar_lea.vmem %s0, %s250
        %s252 = smul.u32 2, %s24
        %s253 = smul.u32 2, %s24
        %v255 = vld [vmem:[%s1] sm:$0xff]
        %v256 = vld [vmem:[%s1 + $0x8] sm:$0xff]
        %v257 = vld [vmem:[%s1 + $0x10] sm:$0xff]
        %v258 = vld [vmem:[%s1 + $0x18] sm:$0xff]
        %v259 = vld [vmem:[%s251] sm:$0xff]
        %v260 = vld [vmem:[%s2] sm:$0xff]
        %v261 = vld [vmem:[%s2 + $0x8] sm:$0xff]
        %v262 = vld [vmem:[%s2 + $0x10] sm:$0xff]
        %v263 = vld [vmem:[%s2 + $0x18] sm:$0xff]
        %265 = vset.pattern.permute.xlu0 0
        %266 = vperm.xlu0 %265, %v260
        %v267 = vpop.permute.xlu0 %266
        %270 = vset.pattern.permute.xlu0 0
        %271 = vperm.xlu0 %270, %v261
        %v272 = vpop.permute.xlu0 %271
        %275 = vset.pattern.permute.xlu0 0
        %276 = vperm.xlu0 %275, %v262
        %v277 = vpop.permute.xlu0 %276
        %280 = vset.pattern.permute.xlu0 0
        %281 = vperm.xlu0 %280, %v263
        %v282 = vpop.permute.xlu0 %281
        %v285 = vcombine.high %v259, %v259
        %vm286 = vcmask 31744
        %v288 = vsel %vm286, %v255, 0
        %v291 = vsel %vm286, %v256, 0
        %v294 = vsel %vm286, %v257, 0
        %v297 = vsel %vm286, %v258, 0
        %vm299 = vcmask 1043456
        %v300 = vsel %vm299, %v259, 0
        %v302 = vsel %vm299, %v285, 0
        %304 = vmatprep.subr.mxu0 %v302
        %305 = vmatpush1.msra.mxu0 %v300
        %306 = vmatprep.subr.mxu0 0.0
        %307 = vmatpush1.msra.mxu0 0.0
        %308 = vmatprep.subr.mxu0 0.0
        %309 = vmatpush1.msra.mxu0 0.0
        %310 = vmatprep.subr.mxu0 0.0
        %311 = vmatpush1.msra.mxu0 0.0
        %312 = vmatprep.subr.mxu0 0.0
        %313 = vmatpush1.msra.mxu0 0.0
        %314 = vmatprep.subr.mxu0 0.0
        %315 = vmatpush1.msra.mxu0 0.0
        %316 = vmatprep.subr.mxu0 0.0
        %317 = vmatpush1.msra.mxu0 0.0
        %318 = vmatprep.subr.mxu0 0.0
        %319 = vmatpush1.msra.mxu0 0.0
        %320 = vmatprep.subr.mxu0 0.0
        %321 = vmatpush1.msra.mxu0 0.0
        %322 = vmatprep.subr.mxu0 0.0
        %323 = vmatpush1.msra.mxu0 0.0
        %324 = vmatprep.subr.mxu0 0.0
        %325 = vmatpush1.msra.mxu0 0.0
        %326 = vmatprep.subr.mxu0 0.0
        %327 = vmatpush1.msra.mxu0 0.0
        %328 = vmatprep.subr.mxu0 0.0
        %329 = vmatpush1.msra.mxu0 0.0
        %330 = vmatprep.subr.mxu0 0.0
        %331 = vmatpush1.msra.mxu0 0.0
        %332 = vmatprep.subr.mxu0 0.0
        %333 = vmatpush1.msra.mxu0 0.0
        %334 = vmatprep.subr.mxu0 0.0
        %335 = vmatpush1.msra.mxu0 0.0
        %336 = vmatprep.subr.mxu0 0.0
        %337 = vmatpush1.msra.mxu0 0.0
        %338 = vmatprep.subr.mxu0 0.0
        %339 = vmatpush1.msra.mxu0 0.0
        %340 = vmatprep.subr.mxu0 0.0
        %341 = vmatpush1.msra.mxu0 0.0
        %342 = vmatprep.subr.mxu0 0.0
        %343 = vmatpush1.msra.mxu0 0.0
        %344 = vmatprep.subr.mxu0 0.0
        %345 = vmatpush1.msra.mxu0 0.0
        %346 = vmatprep.subr.mxu0 0.0
        %347 = vmatpush1.msra.mxu0 0.0
        %348 = vmatprep.subr.mxu0 0.0
        %349 = vmatpush1.msra.mxu0 0.0
        %350 = vmatprep.subr.mxu0 0.0
        %351 = vmatpush1.msra.mxu0 0.0
        %352 = vmatprep.subr.mxu0 0.0
        %353 = vmatpush1.msra.mxu0 0.0
        %354 = vmatprep.subr.mxu0 0.0
        %355 = vmatpush1.msra.mxu0 0.0
        %356 = vmatprep.subr.mxu0 0.0
        %357 = vmatpush1.msra.mxu0 0.0
        %358 = vmatprep.subr.mxu0 0.0
        %359 = vmatpush1.msra.mxu0 0.0
        %360 = vmatprep.subr.mxu0 0.0
        %361 = vmatpush1.msra.mxu0 0.0
        %362 = vmatprep.subr.mxu0 0.0
        %363 = vmatpush1.msra.mxu0 0.0
        %364 = vmatprep.subr.mxu0 0.0
        %365 = vmatpush1.msra.mxu0 0.0
        %366 = vmatprep.subr.mxu0 0.0
        %367 = vmatpush1.msra.mxu0 0.0
        %368 = vmatprep.mubr.f32.mxu0 0.0
        %369 = vmatmul.mubr.f32.gmra.mrb[0].mxu0 %v288
        %v370 = vpop.f32.mrb[0].mxu0
        %v371 = vadd.f32 %v267, %v370
        %v372 = vpop.f32.mrb[0].mxu0
        %v373 = vadd.f32 %v267, %v372
        %374 = vmatprep.mubr.f32.mxu0 0.0
        %375 = vmatmul.mubr.f32.gmra.mrb[0].mxu0 %v291
        %v376 = vpop.f32.mrb[0].mxu0
        %v377 = vadd.f32 %v272, %v376
        %v378 = vpop.f32.mrb[0].mxu0
        %v379 = vadd.f32 %v272, %v378
        %380 = vmatprep.mubr.f32.mxu0 0.0
        %381 = vmatmul.mubr.f32.gmra.mrb[0].mxu0 %v294
        %v382 = vpop.f32.mrb[0].mxu0
        %v383 = vadd.f32 %v277, %v382
        %v384 = vpop.f32.mrb[0].mxu0
        %v385 = vadd.f32 %v277, %v384
        %386 = vmatprep.mubr.f32.mxu0 0.0
        %387 = vmatmul.mubr.f32.gmra.mrb[0].mxu0 %v297
        %v388 = vpop.f32.mrb[0].mxu0
        %v389 = vadd.f32 %v282, %v388
        %v390 = vpop.f32.mrb[0].mxu0
        %v391 = vadd.f32 %v282, %v390
        %392 = vdwg.mxu0
        %v393 = vmax.f32 %v371, 0.0
        %v394 = vmax.f32 %v373, 0.0
        %v395 = vmax.f32 %v377, 0.0
        %v396 = vmax.f32 %v379, 0.0
        %v397 = vmax.f32 %v383, 0.0
        %v398 = vmax.f32 %v385, 0.0
        %v399 = vmax.f32 %v389, 0.0
        %v400 = vmax.f32 %v391, 0.0
        %v401 = vpack.c.bf16 %v395, %v393
        %v402 = vpack.c.bf16 %v396, %v394
        %v403 = vpack.c.bf16 %v399, %v397
        %v404 = vpack.c.bf16 %v400, %v398
        %v405 = vld [vmem:[%s3] sm:$0xf]
        %v406 = vld [vmem:[%s4] sm:$0xff]
        %408 = vset.pattern.permute.xlu0 0
        %409 = vperm.xlu0 %408, %v406
        %v410 = vpop.permute.xlu0 %409
        %vm412 = vcmask 261120
        %v414 = vsel %vm412, %v405, 0
        %416 = vmatprep.subr.bf16.mxu0 %v402
        %417 = vmatpush1.bf16.msra.mxu0 %v401
        %418 = vmatprep.subr.bf16.mxu0 %v404
        %419 = vmatpush1.bf16.msra.mxu0 %v403
        %420 = vmatprep.subr.bf16.mxu0 0
        %421 = vmatpush1.bf16.msra.mxu0 0
        %422 = vmatprep.subr.bf16.mxu0 0
        %423 = vmatpush1.bf16.msra.mxu0 0
        %424 = vmatprep.subr.bf16.mxu0 0
        %425 = vmatpush1.bf16.msra.mxu0 0
        %426 = vmatprep.subr.bf16.mxu0 0
        %427 = vmatpush1.bf16.msra.mxu0 0
        %428 = vmatprep.subr.bf16.mxu0 0
        %429 = vmatpush1.bf16.msra.mxu0 0
        %430 = vmatprep.subr.bf16.mxu0 0
        %431 = vmatpush1.bf16.msra.mxu0 0
        %432 = vmatprep.subr.bf16.mxu0 0
        %433 = vmatpush1.bf16.msra.mxu0 0
        %434 = vmatprep.subr.bf16.mxu0 0
        %435 = vmatpush1.bf16.msra.mxu0 0
        %436 = vmatprep.subr.bf16.mxu0 0
        %437 = vmatpush1.bf16.msra.mxu0 0
        %438 = vmatprep.subr.bf16.mxu0 0
        %439 = vmatpush1.bf16.msra.mxu0 0
        %440 = vmatprep.subr.bf16.mxu0 0
        %441 = vmatpush1.bf16.msra.mxu0 0
        %442 = vmatprep.subr.bf16.mxu0 0
        %443 = vmatpush1.bf16.msra.mxu0 0
        %444 = vmatprep.subr.bf16.mxu0 0
        %445 = vmatpush1.bf16.msra.mxu0 0
        %446 = vmatprep.subr.bf16.mxu0 0
        %447 = vmatpush1.bf16.msra.mxu0 0
        %448 = vmatprep.mubr.bf16.mxu0 0
        %449 = vmatmul.mubr.bf16.gmra.mrb[0].mxu0 %v414
        %v450 = vpop.f32.mrb[0].mxu0
        %v451 = vadd.f32 %v410, %v450
        %v452 = vpop.f32.mrb[0].mxu0
        %v453 = vadd.f32 %v410, %v452
        %v454 = vpop.f32.mrb[0].mxu0
        %v455 = vpop.f32.mrb[0].mxu0
        %456 = vdwg.mxu0
        %v457 = vrot.slane %v451, 4
        %v458 = vmax.f32 %v451, %v457
        %v459 = vrot.slane %v458, 2
        %v460 = vmax.f32 %v458, %v459
        %v461 = vrot.slane %v460, 1
        %v462 = vmax.f32 %v460, %v461
        %v463 = vrot.slane %v453, 4
        %v464 = vmax.f32 %v453, %v463
        %v465 = vrot.slane %v464, 2
        %v466 = vmax.f32 %v464, %v465
        %v467 = vrot.slane %v466, 1
        %v468 = vmax.f32 %v466, %v467
        %v469 = vsub.f32 %v451, %v462
        %v470 = vsub.f32 %v453, %v468
        %v471 = vmul.f32 %v469, 1.442695
        %v472 = vpow.pop %v471
        %v473 = vmul.f32 %v470, 1.442695
        %v474 = vpow.pop %v473
        %v475 = vrot.slane %v472, 4
        %v476 = vadd.f32 %v472, %v475
        %v477 = vrot.slane %v476, 2
        %v478 = vadd.f32 %v476, %v477
        %v479 = vrot.slane %v478, 1
        %v480 = vadd.f32 %v478, %v479
        %v481 = vrot.slane %v474, 4
        %v482 = vadd.f32 %v474, %v481
        %v483 = vrot.slane %v482, 2
        %v484 = vadd.f32 %v482, %v483
        %v485 = vrot.slane %v484, 1
        %v486 = vadd.f32 %v484, %v485
        %v487 = vrcp.pop %v480
        %v488 = vrcp.pop %v486
        %v489 = vmul.f32 %v472, %v487
        %v490 = vmul.f32 %v474, %v488
        %491 = vst [vmem:[%s242] sm:$0xff] %v489
        %492 = vst [vmem:[%s242 + $0x8] sm:$0xff] %v490
        %s493 = sand.u32 %s153, 1
        %s494 = scalar_lea.sflag [#allocation3], %s493
        %s495 = sand.u32 %s153, 1
        %s496 = smul.addr %s495, 16
        %s497 = scalar_lea.vmem [#allocation2], %s496
        // Predicated region
        $region41: #{tpu_custom_call.1} parent=39 // pred_check
          %p498 = pneg %p163
        $region42: #{tpu_custom_call.1} parent=39 // pred_check_branch
          %500 = sbr.rel (%p498) target = $region44
        $region43: #{tpu_custom_call.1} parent=39 // pred_region
          %s501 = smul.u32 2, %s24
          %s503 = ssub.s32 256, 256
          %504 = vsyncadd %s494, %s503
          %s505 = smul.addr %s23, 2
          %s506 = sadd.s32 %s501, %s505
          %s507 = smul.addr %s506, 128
          %s508 = scalar_lea.hbm %s5, %s507
          %s510 = sshll.u32 %s497, 4
          %s511 = int_to_ptr.vmem [resolvable:$true] %s510
          %513 = dma.vmem_to_hbm [thread:$0]  %s511, 256, %s508, %s494
        $region44: #{tpu_custom_call.1} parent=39 // pred_fallthru
          _
      $region40: #{tpu_custom_call.1} parent=5 // pred_fallthru
        _
      %p514 = scmp.le.s32.totalorder 2, %s14
      // Predicated region
      $region45: #{tpu_custom_call.1} parent=5 // pred_check
        %p515 = pneg %p514
      $region46: #{tpu_custom_call.1} parent=5 // pred_check_branch
        %517 = sbr.rel (%p515) target = $region48
      $region47: #{tpu_custom_call.1} parent=5 // pred_region
        %s518 = ssub.s32 %s14, 2
        // Predicated region
        $region49: #{tpu_custom_call.1} parent=47 // pred_check
          %p519 = pneg %p169
        $region50: #{tpu_custom_call.1} parent=47 // pred_check_branch
          %521 = sbr.rel (%p519) target = $region52
        $region51: #{tpu_custom_call.1} parent=47 // pred_region
          %s522 = sand.u32 %s154, 1
          %s523 = scalar_lea.sflag [#allocation3], %s522
          %s524 = sand.u32 %s154, 1
          %s525 = smul.addr %s524, 16
          %s526 = scalar_lea.vmem [#allocation2], %s525
          %527 = dma.done %s523, 256
        $region52: #{tpu_custom_call.1} parent=47 // pred_fallthru
          _
      $region48: #{tpu_custom_call.1} parent=5 // pred_fallthru
        _
    $region6: #{tpu_custom_call.1} parent=1 // loop_footer
      %s18 = sadd.s32 1, %s14
    $region7: #{tpu_custom_call.1} parent=1 // loop_footer_branch
      %13 = sbr.rel target = $region3
    $region8: #{tpu_custom_call.1} parent=1 // loop_exit
      _
    %528 = vsyncpa [#allocation3], 1
    %s529 = scalar_lea.sflag [#allocation3], 1
    %530 = vsyncpa %s529, 1

</llo_original>
